<compile_context>
chip_gen: v5e
topology: v5e:2x2
jax: 0.10.0
libtpu: 0.0.40
codegen_flags: <defaults>
</compile_context>

<pallas_src>
import functools

import jax
import jax.numpy as jnp
from jax.experimental import pallas as pl
from jax.experimental.pallas import tpu as pltpu

LANES = 128
_TARGET_BLOCK_BYTES = 2 * 1024 * 1024  # ~2 MiB of streamed data per block


def _default_tile_rows(dtype):
    itemsize = jnp.dtype(dtype).itemsize
    # 2 MiB blocks: 4096 rows for f32, 8192 for bf16, multiples of 32.
    return max(256, _TARGET_BLOCK_BYTES // (LANES * itemsize))


def _num_tensorcores():
    """Best-effort TensorCore count; None if it cannot be determined."""
    try:
        info = pltpu.get_tpu_info()
    except Exception:
        return None
    for name in ("num_cores", "core_count", "cores_per_chip",
                 "num_tensorcores", "tensor_cores_per_chip",
                 "num_tensor_cores"):
        v = getattr(info, name, None)
        if v is None:
            continue
        try:
            v = int(v)
        except (TypeError, ValueError):
            continue
        if v > 0:
            return v
    return None


def _iou_partial_kernel(yt_ref, yp_ref, inter_out, total_out,
                        inter_acc, total_acc, *,
                        tile_rows, acc_rows, rows, blocks_per_split,
                        first_masked_block, needs_mask):
    c = pl.program_id(0)
    j = pl.program_id(1)

    @pl.when(j == 0)
    def _init():
        inter_acc[...] = jnp.zeros_like(inter_acc)
        total_acc[...] = jnp.zeros_like(total_acc)

    yt = yt_ref[...].astype(jnp.float32)
    yp = yp_ref[...].astype(jnp.float32)

    def _accum(yt_v, yp_v):
        # Sublane-aligned VALU tree-fold of the whole block into one
        # (acc_rows, 128) vreg-shaped partial sum, then a single RMW of the
        # tiny accumulator (no full-tile accumulator traffic).
        prod = (yt_v * yp_v).reshape(-1, acc_rows, LANES).sum(axis=0)
        ssum = (yt_v + yp_v).reshape(-1, acc_rows, LANES).sum(axis=0)
        inter_acc[...] += prod
        total_acc[...] += ssum

    if needs_mask:
        b = c * blocks_per_split + j  # virtual block index (pre-clamp)

        # Only the overhang block(s) pay for the iota/compare/where.
        @pl.when(b >= first_masked_block)
        def _ragged():
            row_ids = b * tile_rows + jax.lax.broadcasted_iota(
                jnp.int32, (tile_rows, LANES), 0)
            valid = row_ids < rows
            _accum(jnp.where(valid, yt, 0.0), jnp.where(valid, yp, 0.0))

        @pl.when(b < first_masked_block)
        def _full():
            _accum(yt, yp)
    else:
        _accum(yt, yp)

    @pl.when(j == pl.num_programs(1) - 1)
    def _finalize():
        inter_out[...] = jnp.sum(inter_acc[...]).reshape(1, 1)
        total_out[...] = jnp.sum(total_acc[...]).reshape(1, 1)


def _iou_partial_sums(yt, yp, max_tile_rows=None):
    """Returns per-split (intersection, total) partial sums over (rows, 128)."""
    rows = yt.shape[0]
    if max_tile_rows is None:
        max_tile_rows = _default_tile_rows(yt.dtype)

    if rows <= max_tile_rows:
        tile_rows = rows          # one full-extent block (always legal)
        num_blocks = 1
    else:
        tile_rows = max_tile_rows  # multiple of 32 by construction
        num_blocks = pl.cdiv(rows, tile_rows)

    # Single-vreg accumulator when the tile is sublane-aligned; otherwise
    # (only possible in the single-block case) fall back to tile-shaped acc.
    acc_rows = 8 if tile_rows % 8 == 0 else tile_rows

    cores = _num_tensorcores()
    if cores is None:
        cores = 2  # assume 2 TCs (v7x); harmless on single-TC chips
    num_splits = 2 if (cores >= 2 and num_blocks >= 2) else 1
    blocks_per_split = pl.cdiv(num_blocks, num_splits)

    # First virtual block whose rows overhang the real `rows`.
    first_masked_block = num_blocks if rows % tile_rows == 0 else num_blocks - 1
    needs_mask = (num_splits * blocks_per_split) > first_masked_block

    def in_index_map(c, j):
        b = c * blocks_per_split + j
        # Clamp the (at most one) duplicated virtual block onto valid memory;
        # its contribution is zeroed by the mask inside the kernel.
        return (jnp.minimum(b, num_blocks - 1), 0)

    kernel = functools.partial(
        _iou_partial_kernel,
        tile_rows=tile_rows, acc_rows=acc_rows, rows=rows,
        blocks_per_split=blocks_per_split,
        first_masked_block=first_masked_block, needs_mask=needs_mask)

    itemsize = jnp.dtype(yt.dtype).itemsize
    cost = pl.CostEstimate(flops=4 * rows * LANES, transcendentals=0,
                           bytes_accessed=2 * rows * LANES * itemsize
                           + 8 * num_splits)

    return pl.pallas_call(
        kernel,
        out_shape=(jax.ShapeDtypeStruct((num_splits, 1), jnp.float32),
                   jax.ShapeDtypeStruct((num_splits, 1), jnp.float32)),
        grid_spec=pltpu.PrefetchScalarGridSpec(
            num_scalar_prefetch=0,
            grid=(num_splits, blocks_per_split),
            in_specs=[
                pl.BlockSpec((tile_rows, LANES), in_index_map),
                pl.BlockSpec((tile_rows, LANES), in_index_map),
            ],
            out_specs=[
                pl.BlockSpec((1, 1), lambda c, j: (c, 0)),
                pl.BlockSpec((1, 1), lambda c, j: (c, 0)),
            ],
            scratch_shapes=[
                pltpu.VMEM((acc_rows, LANES), jnp.float32),
                pltpu.VMEM((acc_rows, LANES), jnp.float32),
            ],
        ),
        compiler_params=pltpu.CompilerParams(
            dimension_semantics=("parallel", "arbitrary")),
        cost_estimate=cost,
    )(yt, yp)


def iou_loss(y_true, y_pred, smooth=0.001, max_tile_rows=None):
    assert y_true.shape == y_pred.shape
    n = int(y_true.size)

    yt_flat = y_true.reshape(-1)
    yp_flat = y_pred.reshape(-1)

    rows = n // LANES
    rem = n - rows * LANES

    # <128-element ragged tail reduced in plain JAX (no full-array pad copy).
    if rem:
        yt_tail = yt_flat[rows * LANES:].astype(jnp.float32)
        yp_tail = yp_flat[rows * LANES:].astype(jnp.float32)
        tail_inter = jnp.sum(yt_tail * yp_tail)
        tail_total = jnp.sum(yt_tail + yp_tail)
    else:
        tail_inter = jnp.float32(0.0)
        tail_total = jnp.float32(0.0)

    if rows == 0:
        inter = tail_inter
        total = tail_total
    else:
        if rem:
            yt_main = yt_flat[:rows * LANES].reshape(rows, LANES)
            yp_main = yp_flat[:rows * LANES].reshape(rows, LANES)
        else:
            yt_main = yt_flat.reshape(rows, LANES)
            yp_main = yp_flat.reshape(rows, LANES)
        inter_p, total_p = _iou_partial_sums(yt_main, yp_main, max_tile_rows)
        inter = jnp.sum(inter_p) + tail_inter
        total = jnp.sum(total_p) + tail_total

    union = total - inter
    return 1.0 - (inter + smooth) / (union + smooth)


def _ref_iou_loss(y_true, y_pred, smooth=0.001):
    yt = y_true.astype(jnp.float32)
    yp = y_pred.astype(jnp.float32)
    inter = jnp.sum(yt * yp)
    union = jnp.sum(yt + yp) - inter
    return 1.0 - (inter + smooth) / (union + smooth)


if __name__ == "__main__":
    key = jax.random.PRNGKey(0)
    k1, k2, k3, k4 = jax.random.split(key, 4)

    # --- main check: NCHW segmentation-style inputs (single-block path) ---
    shape = (2, 4, 16, 16)
    y_true = (jax.random.uniform(k1, shape) > 0.5).astype(jnp.float32)
    y_pred = jax.random.uniform(k2, shape, dtype=jnp.float32)

    loss = iou_loss(y_true, y_pred, smooth=0.001)
    jax.block_until_ready(loss)
    ref = _ref_iou_loss(y_true, y_pred, 0.001)
    assert jnp.allclose(loss, ref, rtol=1e-5, atol=1e-6), (loss, ref)

    # --- ragged tail + multi-block (+ possibly 2-split) path, forced small tiles ---
    shape2 = (3, 5, 17, 19)  # 4845 elems -> 37 full rows + 109-element tail
    y_true2 = (jax.random.uniform(k3, shape2) > 0.5).astype(jnp.float32)
    y_pred2 = jax.random.uniform(k4, shape2, dtype=jnp.float32)
    loss2 = iou_loss(y_true2, y_pred2, smooth=0.001, max_tile_rows=16)
    jax.block_until_ready(loss2)
    ref2 = _ref_iou_loss(y_true2, y_pred2, 0.001)
    assert jnp.allclose(loss2, ref2, rtol=1e-5, atol=1e-5), (loss2, ref2)

    # --- bf16 inputs accepted directly (halves HBM traffic) ---
    loss3 = iou_loss(y_true.astype(jnp.bfloat16), y_pred.astype(jnp.bfloat16))
    jax.block_until_ready(loss3)
    ref3 = _ref_iou_loss(y_true.astype(jnp.bfloat16),
                         y_pred.astype(jnp.bfloat16))
    assert jnp.allclose(loss3, ref3, rtol=1e-4, atol=1e-4), (loss3, ref3)

    print("KERNEL_OK")
</pallas_src>

<mosaic_0001>
module attributes {stable_mosaic.version = 11 : i64} {
  func.func @_iou_partial_kernel(%arg0: i32, %arg1: i32, %arg2: memref<16x128xf32, #tpu.memory_space<vmem>>, %arg3: memref<16x128xf32, #tpu.memory_space<vmem>>, %arg4: memref<1x1xf32, #tpu.memory_space<vmem>>, %arg5: memref<1x1xf32, #tpu.memory_space<vmem>>, %arg6: memref<8x128xf32, #tpu.memory_space<vmem>>, %arg7: memref<8x128xf32, #tpu.memory_space<vmem>>) attributes {dimension_semantics = [#tpu.dimension_semantics<parallel>, #tpu.dimension_semantics<arbitrary>], iteration_bounds = array<i64: 1, 1>, scalar_prefetch = 0 : i64, scratch_operands = 2 : i64, tpu.core_type = #tpu.core_type<tc>, window_params = [{transform_indices = @transform_0, window_bounds = array<i64: 16, 128>}, {transform_indices = @transform_1, window_bounds = array<i64: 16, 128>}, {transform_indices = @transform_2, window_bounds = array<i64: 1, 1>}, {transform_indices = @transform_3, window_bounds = array<i64: 1, 1>}]} {
    %c0_i32 = arith.constant 0 : i32
    %0 = arith.cmpi eq, %arg1, %c0_i32 : i32
    %1 = arith.extui %0 : i1 to i32
    %c0_i32_0 = arith.constant 0 : i32
    %2 = arith.cmpi ne, %1, %c0_i32_0 : i32
    scf.if %2 {
      %cst_15 = arith.constant 0.000000e+00 : f32
      %20 = vector.broadcast %cst_15 : f32 to vector<8x128xf32>
      %c0_16 = arith.constant 0 : index
      %c0_17 = arith.constant 0 : index
      %21 = vector.load %arg6[%c0_16, %c0_17] : memref<8x128xf32, #tpu.memory_space<vmem>>, vector<8x128xf32>
      tpu.vector_store %arg6[%c0_16, %c0_17], %20 {strides = array<i32>} : memref<8x128xf32, #tpu.memory_space<vmem>>, vector<8x128xf32>,
      %cst_18 = arith.constant 0.000000e+00 : f32
      %22 = vector.broadcast %cst_18 : f32 to vector<8x128xf32>
      %c0_19 = arith.constant 0 : index
      %c0_20 = arith.constant 0 : index
      %23 = vector.load %arg7[%c0_19, %c0_20] : memref<8x128xf32, #tpu.memory_space<vmem>>, vector<8x128xf32>
      tpu.vector_store %arg7[%c0_19, %c0_20], %22 {strides = array<i32>} : memref<8x128xf32, #tpu.memory_space<vmem>>, vector<8x128xf32>,
    } else {
    }
    %c0 = arith.constant 0 : index
    %c0_1 = arith.constant 0 : index
    %3 = vector.load %arg2[%c0, %c0_1] : memref<16x128xf32, #tpu.memory_space<vmem>>, vector<16x128xf32>
    %c0_2 = arith.constant 0 : index
    %c0_3 = arith.constant 0 : index
    %4 = vector.load %arg3[%c0_2, %c0_3] : memref<16x128xf32, #tpu.memory_space<vmem>>, vector<16x128xf32>
    %5 = arith.mulf %3, %4 : vector<16x128xf32>
    %6 = vector.shape_cast %5 : vector<16x128xf32> to vector<2x8x128xf32>
    %cst = arith.constant dense<0.000000e+00> : vector<8x128xf32>
    %7 = vector.multi_reduction <add>, %6, %cst [0] : vector<2x8x128xf32> to vector<8x128xf32>
    %8 = arith.addf %3, %4 : vector<16x128xf32>
    %9 = vector.shape_cast %8 : vector<16x128xf32> to vector<2x8x128xf32>
    %cst_4 = arith.constant dense<0.000000e+00> : vector<8x128xf32>
    %10 = vector.multi_reduction <add>, %9, %cst_4 [0] : vector<2x8x128xf32> to vector<8x128xf32>
    %c0_5 = arith.constant 0 : index
    %c0_6 = arith.constant 0 : index
    %11 = vector.load %arg6[%c0_5, %c0_6] : memref<8x128xf32, #tpu.memory_space<vmem>>, vector<8x128xf32>
    %12 = arith.addf %11, %7 : vector<8x128xf32>
    %c0_7 = arith.constant 0 : index
    %c0_8 = arith.constant 0 : index
    %13 = vector.load %arg6[%c0_7, %c0_8] : memref<8x128xf32, #tpu.memory_space<vmem>>, vector<8x128xf32>
    tpu.vector_store %arg6[%c0_7, %c0_8], %12 {strides = array<i32>} : memref<8x128xf32, #tpu.memory_space<vmem>>, vector<8x128xf32>,
    %c0_9 = arith.constant 0 : index
    %c0_10 = arith.constant 0 : index
    %14 = vector.load %arg7[%c0_9, %c0_10] : memref<8x128xf32, #tpu.memory_space<vmem>>, vector<8x128xf32>
    %15 = arith.addf %14, %10 : vector<8x128xf32>
    %c0_11 = arith.constant 0 : index
    %c0_12 = arith.constant 0 : index
    %16 = vector.load %arg7[%c0_11, %c0_12] : memref<8x128xf32, #tpu.memory_space<vmem>>, vector<8x128xf32>
    tpu.vector_store %arg7[%c0_11, %c0_12], %15 {strides = array<i32>} : memref<8x128xf32, #tpu.memory_space<vmem>>, vector<8x128xf32>,
    %c0_i32_13 = arith.constant 0 : i32
    %17 = arith.cmpi eq, %arg1, %c0_i32_13 : i32
    %18 = arith.extui %17 : i1 to i32
    %c0_i32_14 = arith.constant 0 : i32
    %19 = arith.cmpi ne, %18, %c0_i32_14 : i32
    scf.if %19 {
      %c0_15 = arith.constant 0 : index
      %c0_16 = arith.constant 0 : index
      %20 = vector.load %arg6[%c0_15, %c0_16] : memref<8x128xf32, #tpu.memory_space<vmem>>, vector<8x128xf32>
      %21 = vector.shape_cast %20 : vector<8x128xf32> to vector<1x8x128xf32>
      %cst_17 = arith.constant dense<0.000000e+00> : vector<1xf32>
      %22 = vector.multi_reduction <add>, %21, %cst_17 [1, 2] : vector<1x8x128xf32> to vector<1xf32>
      %23 = vector.shape_cast %22 : vector<1xf32> to vector<1x1x1xf32>
      %24 = vector.extract %23[0, 0, 0] : f32 from vector<1x1x1xf32>
      %25 = vector.broadcast %24 : f32 to vector<1x1xf32>
      %c0_18 = arith.constant 0 : index
      %c0_19 = arith.constant 0 : index
      %26 = vector.load %arg4[%c0_18, %c0_19] : memref<1x1xf32, #tpu.memory_space<vmem>>, vector<1x1xf32>
      tpu.vector_store %arg4[%c0_18, %c0_19], %25 {strides = array<i32>} : memref<1x1xf32, #tpu.memory_space<vmem>>, vector<1x1xf32>,
      %c0_20 = arith.constant 0 : index
      %c0_21 = arith.constant 0 : index
      %27 = vector.load %arg7[%c0_20, %c0_21] : memref<8x128xf32, #tpu.memory_space<vmem>>, vector<8x128xf32>
      %28 = vector.shape_cast %27 : vector<8x128xf32> to vector<1x8x128xf32>
      %cst_22 = arith.constant dense<0.000000e+00> : vector<1xf32>
      %29 = vector.multi_reduction <add>, %28, %cst_22 [1, 2] : vector<1x8x128xf32> to vector<1xf32>
      %30 = vector.shape_cast %29 : vector<1xf32> to vector<1x1x1xf32>
      %31 = vector.extract %30[0, 0, 0] : f32 from vector<1x1x1xf32>
      %32 = vector.broadcast %31 : f32 to vector<1x1xf32>
      %c0_23 = arith.constant 0 : index
      %c0_24 = arith.constant 0 : index
      %33 = vector.load %arg5[%c0_23, %c0_24] : memref<1x1xf32, #tpu.memory_space<vmem>>, vector<1x1xf32>
      tpu.vector_store %arg5[%c0_23, %c0_24], %32 {strides = array<i32>} : memref<1x1xf32, #tpu.memory_space<vmem>>, vector<1x1xf32>,
    } else {
    }
    return
  }
  func.func @transform_0(%arg0: i32, %arg1: i32) -> (i32, i32) {
    %c1_i32 = arith.constant 1 : i32
    %0 = arith.muli %arg0, %c1_i32 : i32
    %1 = arith.addi %0, %arg1 : i32
    %c0_i32 = arith.constant 0 : i32
    %2 = arith.minsi %1, %c0_i32 : i32
    %c0_i32_0 = arith.constant 0 : i32
    %c0_i32_1 = arith.constant 0 : i32
    return %2, %c0_i32_0 : i32, i32
  }
  func.func @transform_1(%arg0: i32, %arg1: i32) -> (i32, i32) {
    %c1_i32 = arith.constant 1 : i32
    %0 = arith.muli %arg0, %c1_i32 : i32
    %1 = arith.addi %0, %arg1 : i32
    %c0_i32 = arith.constant 0 : i32
    %2 = arith.minsi %1, %c0_i32 : i32
    %c0_i32_0 = arith.constant 0 : i32
    %c0_i32_1 = arith.constant 0 : i32
    return %2, %c0_i32_0 : i32, i32
  }
  func.func @transform_2(%arg0: i32, %arg1: i32) -> (i32, i32) {
    %c0_i32 = arith.constant 0 : i32
    %c0_i32_0 = arith.constant 0 : i32
    return %arg0, %c0_i32 : i32, i32
  }
  func.func @transform_3(%arg0: i32, %arg1: i32) -> (i32, i32) {
    %c0_i32 = arith.constant 0 : i32
    %c0_i32_0 = arith.constant 0 : i32
    return %arg0, %c0_i32 : i32, i32
  }
}

</mosaic_0001>

<llo_original>
// kernel: tpu_custom_call.1
$region0: #{tpu_custom_call.1}
  #allocation0 [shape = 'u32[]', space=smem, size = 0x4, offset = 0x4, fixed_abs, tag = 'smem constant byte address 0x4 - core index']
  #allocation1 [shape = 'u32[72,128]{1,0:T(1,128)}', space=vmem, size = 0x9000, scoped, tag = 'internal scratch']
  #allocation2 [shape = 'f32[8,128]{1,0:T(8,128)}', space=vmem, size = 0x1000, scoped, tag = 'scratch operand']
  #allocation3 [shape = 'f32[8,128]{1,0:T(8,128)}', space=vmem, size = 0x1000, scoped, tag = 'scratch operand']
  %s0 = inlined_call_operand.hbm [shape: f32[16,128], index: 0, kind: input, shape index: {}]
  %s1 = inlined_call_operand.hbm [shape: f32[16,128], index: 1, kind: input, shape index: {}]
  %s2 = inlined_call_operand.hbm [shape: f32[1,1], index: 2, kind: output, shape index: {0}]
  %s3 = inlined_call_operand.hbm [shape: f32[1,1], index: 3, kind: output, shape index: {1}]
  %4 = xla_tuple %s2, %s3
  %s5 = sld [smem:[#allocation0]]
  $region42: #{tpu_custom_call.1} parent=0
    _
  %s7 = ssub.s32 1, %s5
  %s8 = scalar_select 0, %s7, %s5
  $region1: #{tpu_custom_call.1} parent=0
    #allocation4 [shape = 'u8[8192]{0}', space=vmem, size = 0x2000, scoped, tag = 'input window, operand 0, single buffered']
    #allocation5 [shape = 's32[1]{0}', space=sflag, size = 0x4, scoped, tag = 'scoped memory for tpu_custom_call.1']
    #allocation6 [shape = 's32[1]{0}', space=sflag, size = 0x4, scoped, tag = 'scoped memory for tpu_custom_call.1']
    #allocation7 [shape = 'u8[8192]{0}', space=vmem, size = 0x2000, scoped, tag = 'input window, operand 1, single buffered']
    #allocation8 [shape = 's32[1]{0}', space=sflag, size = 0x4, scoped, tag = 'scoped memory for tpu_custom_call.1']
    #allocation9 [shape = 'u8[512]{0}', space=vmem, size = 0x400, scoped, tag = 'output window, operand 0, single buffered']
    #allocation10 [shape = 'u8[512]{0}', space=vmem, size = 0x400, scoped, tag = 'output window, operand 1, single buffered']
    #allocation11 [shape = 's32[1]{0}', space=sflag, size = 0x4, scoped, tag = 'scoped memory for tpu_custom_call.1']
    %9 = vsyncpa [#allocation5], 0
    %10 = vsyncpa [#allocation8], 0
    %11 = vsyncpa [#allocation6], 0
    %12 = vsyncpa [#allocation11], 0
    // Predicated region
    $region2: #{tpu_custom_call.1} parent=1 // pred_check
      _
    $region3: #{tpu_custom_call.1} parent=1 // pred_check_branch
      %14 = sbr.rel (0) target = $region5
    $region4: #{tpu_custom_call.1} parent=1 // pred_region
      %s15 = sadd.s32 0, 0
      %p16 = scmp.lt.s32.totalorder %s15, 0
      %s17 = scalar_select %p16, %s15, 0
      %s18 = smul.u32 2, %s17
      %20 = vsyncadd [#allocation5], 0
      %s21 = smul.addr %s18, 8
      %s22 = scalar_lea.hbm %s0, %s21
      %s23 = sshll.u32 %s22, 4
      %s24 = int_to_ptr.hbm [resolvable:$true] %s23
      %s25 = sshll.u32 [#allocation4], 4
      %s26 = int_to_ptr.vmem [resolvable:$true] %s25
      %31 = dma.hbm_to_vmem [thread:$0]  %s24, 256, %s26, [#allocation5], 128, 128, 8
    $region5: #{tpu_custom_call.1} parent=1 // pred_fallthru
      _
    // Predicated region
    $region6: #{tpu_custom_call.1} parent=1 // pred_check
      _
    $region7: #{tpu_custom_call.1} parent=1 // pred_check_branch
      %33 = sbr.rel (0) target = $region9
    $region8: #{tpu_custom_call.1} parent=1 // pred_region
      %s34 = sadd.s32 0, 0
      %p35 = scmp.lt.s32.totalorder %s34, 0
      %s36 = scalar_select %p35, %s34, 0
      %s37 = smul.u32 2, %s36
      %39 = vsyncadd [#allocation8], 0
      %s40 = smul.addr %s37, 8
      %s41 = scalar_lea.hbm %s1, %s40
      %s42 = sshll.u32 %s41, 4
      %s43 = int_to_ptr.hbm [resolvable:$true] %s42
      %s44 = sshll.u32 [#allocation7], 4
      %s45 = int_to_ptr.vmem [resolvable:$true] %s44
      %50 = dma.hbm_to_vmem [thread:$0]  %s43, 256, %s45, [#allocation8], 128, 128, 8
    $region9: #{tpu_custom_call.1} parent=1 // pred_fallthru
      _
    // Predicated region
    $region10: #{tpu_custom_call.1} parent=1 // pred_check
      _
    $region11: #{tpu_custom_call.1} parent=1 // pred_check_branch
      %52 = sbr.rel (0) target = $region13
    $region12: #{tpu_custom_call.1} parent=1 // pred_region
      %54 = dma.done [#allocation5], 256
    $region13: #{tpu_custom_call.1} parent=1 // pred_fallthru
      _
    // Predicated region
    $region14: #{tpu_custom_call.1} parent=1 // pred_check
      _
    $region15: #{tpu_custom_call.1} parent=1 // pred_check_branch
      %56 = sbr.rel (0) target = $region17
    $region16: #{tpu_custom_call.1} parent=1 // pred_region
      %58 = dma.done [#allocation8], 256
    $region17: #{tpu_custom_call.1} parent=1 // pred_fallthru
      _
    %s59 = sadd.s32 0, 0
    %p60 = scmp.lt.s32.totalorder %s59, 0
    %s61 = scalar_select %p60, %s59, 0
    %s62 = smul.u32 2, %s61
    %s63 = sadd.s32 0, 0
    %p64 = scmp.lt.s32.totalorder %s63, 0
    %s65 = scalar_select %p64, %s63, 0
    %s66 = smul.u32 2, %s65
    %p67 = scmp.eq.s32.totalorder 0, 0
    // Predicated region
    $region18: #{tpu_custom_call.1} parent=1 // pred_check
      %p68 = pneg %p67
    $region19: #{tpu_custom_call.1} parent=1 // pred_check_branch
      %70 = sbr.rel (%p68) target = $region21
    $region20: #{tpu_custom_call.1} parent=1 // pred_region
      %71 = vst [vmem:[#allocation2] sm:$0xff] 0.0
      %72 = vst [vmem:[#allocation3] sm:$0xff] 0.0
    $region21: #{tpu_custom_call.1} parent=1 // pred_fallthru
      _
    %v73 = vld [vmem:[#allocation4] sm:$0xff]
    %v74 = vld [vmem:[#allocation4 + $0x8] sm:$0xff]
    %v75 = vld [vmem:[#allocation7] sm:$0xff]
    %v76 = vld [vmem:[#allocation7 + $0x8] sm:$0xff]
    %v77 = vmul.f32 %v73, %v75
    %v78 = vmul.f32 %v74, %v76
    %v79 = vadd.f32 %v77, %v78
    %v80 = vadd.f32 %v73, %v75
    %v81 = vadd.f32 %v74, %v76
    %v82 = vadd.f32 %v80, %v81
    %v83 = vld [vmem:[#allocation2] sm:$0xff]
    %v84 = vadd.f32 %v83, %v79
    %85 = vst [vmem:[#allocation2] sm:$0xff] %v84
    %v86 = vld [vmem:[#allocation3] sm:$0xff]
    %v87 = vadd.f32 %v86, %v82
    %88 = vst [vmem:[#allocation3] sm:$0xff] %v87
    // Predicated region
    $region22: #{tpu_custom_call.1} parent=1 // pred_check
      %p89 = pneg %p67
    $region23: #{tpu_custom_call.1} parent=1 // pred_check_branch
      %91 = sbr.rel (%p89) target = $region25
    $region24: #{tpu_custom_call.1} parent=1 // pred_region
      %v92 = vld [vmem:[#allocation2] sm:$0xff]
      %93 = vadd.xlane.f32.xlu0 %v92
      %v94 = vpop.xlane.xlu0 %93
      %v95 = vrot.slane %v94, 4
      %v96 = vadd.f32 %v94, %v95
      %v97 = vrot.slane %v96, 2
      %v98 = vadd.f32 %v96, %v97
      %v99 = vrot.slane %v98, 1
      %v100 = vadd.f32 %v98, %v99
      %s101 = vtos %v100
      %v102 = vstv %s101
      %vm103 = vcmask 0
      %104 = vst.msk [vmem:[#allocation9] sm:$0x1] %vm103, %v102
      %v105 = vld [vmem:[#allocation3] sm:$0xff]
      %106 = vadd.xlane.f32.xlu0 %v105
      %v107 = vpop.xlane.xlu0 %106
      %v108 = vrot.slane %v107, 4
      %v109 = vadd.f32 %v107, %v108
      %v110 = vrot.slane %v109, 2
      %v111 = vadd.f32 %v109, %v110
      %v112 = vrot.slane %v111, 1
      %v113 = vadd.f32 %v111, %v112
      %s114 = vtos %v113
      %v115 = vstv %s114
      %116 = vst.msk [vmem:[#allocation10] sm:$0x1] %vm103, %v115
    $region25: #{tpu_custom_call.1} parent=1 // pred_fallthru
      _
    // Predicated region
    $region26: #{tpu_custom_call.1} parent=1 // pred_check
      _
    $region27: #{tpu_custom_call.1} parent=1 // pred_check_branch
      %118 = sbr.rel (0) target = $region29
    $region28: #{tpu_custom_call.1} parent=1 // pred_region
      %120 = vsyncadd [#allocation6], 0
      %s122 = sshll.u32 [#allocation9], 4
      %s123 = int_to_ptr.vmem [resolvable:$true] %s122
      %s124 = sshll.u32 %s2, 4
      %s125 = int_to_ptr.hbm [resolvable:$true] %s124
      %127 = dma.vmem_to_hbm [thread:$0]  %s123, 16, %s125, [#allocation6]
    $region29: #{tpu_custom_call.1} parent=1 // pred_fallthru
      _
    // Predicated region
    $region30: #{tpu_custom_call.1} parent=1 // pred_check
      _
    $region31: #{tpu_custom_call.1} parent=1 // pred_check_branch
      %129 = sbr.rel (0) target = $region33
    $region32: #{tpu_custom_call.1} parent=1 // pred_region
      %131 = vsyncadd [#allocation11], 0
      %s133 = sshll.u32 [#allocation10], 4
      %s134 = int_to_ptr.vmem [resolvable:$true] %s133
      %s135 = sshll.u32 %s3, 4
      %s136 = int_to_ptr.hbm [resolvable:$true] %s135
      %138 = dma.vmem_to_hbm [thread:$0]  %s134, 16, %s136, [#allocation11]
    $region33: #{tpu_custom_call.1} parent=1 // pred_fallthru
      _
    // Predicated region
    $region34: #{tpu_custom_call.1} parent=1 // pred_check
      _
    $region35: #{tpu_custom_call.1} parent=1 // pred_check_branch
      %140 = sbr.rel (0) target = $region37
    $region36: #{tpu_custom_call.1} parent=1 // pred_region
      %142 = dma.done [#allocation6], 16
    $region37: #{tpu_custom_call.1} parent=1 // pred_fallthru
      _
    // Predicated region
    $region38: #{tpu_custom_call.1} parent=1 // pred_check
      _
    $region39: #{tpu_custom_call.1} parent=1 // pred_check_branch
      %144 = sbr.rel (0) target = $region41
    $region40: #{tpu_custom_call.1} parent=1 // pred_region
      %146 = dma.done [#allocation11], 16
    $region41: #{tpu_custom_call.1} parent=1 // pred_fallthru
      _
    %147 = vsyncpa [#allocation5], 1
    %148 = vsyncpa [#allocation8], 1
    %149 = vsyncpa [#allocation6], 1
    %150 = vsyncpa [#allocation11], 1

</llo_original>
